<compile_context>
chip_gen: v6e
topology: v6e:2x2x1
jax: 0.10.0
libtpu: 0.0.40
codegen_flags: <defaults>
</compile_context>

<pallas_src>
import functools

import jax
import jax.numpy as jnp
from jax import lax
from jax.experimental import pallas as pl
from jax.experimental.pallas import tpu as pltpu


def _round_up(v, m):
    return (v + m - 1) // m * m


def _loss_kernel(yp_ref, yt_ref, ys_ref,
                 out1_ref, outv_ref, outm_ref,
                 acc1_ref, accv_ref, mono_ref, prev_ref,
                 *, n, tile_n, tiles_per_half):
    h = pl.program_id(0)          # which half of the sample axis ("parallel")
    j = pl.program_id(1)          # tile within the half (sequential reduction)

    @pl.when(j == 0)
    def _init():
        acc1_ref[...] = jnp.zeros_like(acc1_ref)
        accv_ref[...] = jnp.zeros_like(accv_ref)
        mono_ref[...] = jnp.zeros_like(mono_ref)

    # Logical (unclamped) global element index of lane 0 of this tile.  Tiles
    # whose logical start is >= n (duplicate / ragged tiles) are fully masked.
    start = (h * tiles_per_half + j) * tile_n
    lane = lax.broadcasted_iota(jnp.int32, (1, tile_n), 1)
    gidx = start + lane                              # (1, T) global sample index
    valid = gidx < n                                 # (1, T) in-range lanes

    yp = yp_ref[...].astype(jnp.float32)             # (C, T) probabilities
    ys = ys_ref[...].astype(jnp.float32)             # (C, T) probs sorted by x
    yt = yt_ref[...].astype(jnp.int32)               # (1, T) labels

    mask1 = jnp.logical_and(yt == 1, valid)          # class-1 lanes
    mask0 = jnp.logical_and(yt == 0, valid)          # class-0 lanes
    maskb = jnp.logical_or(mask1, mask0)             # lanes entering the BCE

    # ---- BCE: one merged EUP log pass, clamp(min=-100), masked lane sums ----
    merged = jnp.maximum(jnp.log(jnp.where(mask1, yp, 1.0 - yp)), -100.0)
    acc1_ref[...] += jnp.sum(jnp.where(mask1, merged, 0.0), axis=-1, keepdims=True)
    accv_ref[...] += jnp.sum(jnp.where(maskb, merged, 0.0), axis=-1, keepdims=True)
    # sum0 = accv - acc1 and the class counts are derived in the wrapper.

    # ---- Monotonic penalty: relu(y_sorted[k] - y_sorted[k+1]) ---------------
    # XLU roll(+1): lane k now holds ys[k-1]; diff[k] = ys[k-1] - ys[k].
    ys_prev = pltpu.roll(ys, shift=1, axis=1)
    diff = ys_prev - ys
    pair_ok = jnp.logical_and(lane > 0, valid)       # skip wrap lane + ragged tail
    mono_ref[...] += jnp.sum(jnp.where(pair_ok, jnp.maximum(diff, 0.0), 0.0),
                             keepdims=True)

    # Seam with the previous tile of this half: pair (start-1, start).
    @pl.when(jnp.logical_and(j > 0, start < n))
    def _seam():
        bdiff = prev_ref[...] - ys[:, 0:1]
        mono_ref[...] += jnp.sum(jnp.maximum(bdiff, 0.0), keepdims=True)

    prev_ref[...] = ys[:, -1:]

    @pl.when(j == pl.num_programs(1) - 1)
    def _finalize():
        out1_ref[...] = acc1_ref[...][None]          # (1, C, 1) per-half partials
        outv_ref[...] = accv_ref[...][None]
        outm_ref[...] = mono_ref[...][None]


def loss_bce_monotonic_alpha(x, y_pred, y_true, *, alpha, gamma=100.0,
                             low_precision=True, tile_n=None):
    """Forward pass of LossBCEMonotonicAlpha. Returns a (C,) loss vector.

    NOTE: if either class is entirely absent the corresponding mean is NaN,
    matching the torch masked-mean semantics.
    """
    n, c = y_pred.shape

    # TODO(synk): torch.argsort + the sorted-row gather have no clean in-kernel
    # Pallas TPU equivalent; both are done in plain JAX here (and jnp.argsort is
    # stable while torch.argsort is not, so ties in x may order differently).
    mat_dtype = jnp.bfloat16 if low_precision else jnp.float32
    yp_t = y_pred.astype(mat_dtype).T                      # (C, N), lane-major
    ix = jnp.argsort(x.reshape(-1))
    ys_t = jnp.take(yp_t, ix, axis=1)                      # gather in (C, N) layout

    yt_flat = y_true.reshape(-1)
    yt_row = jnp.where(yt_flat == 1, 1,
                       jnp.where(yt_flat == 0, 0, -1)).astype(jnp.int8).reshape(1, -1)

    # ---- Tile sizing: ~2-4 MiB of input per grid step, capped for VMEM ------
    elem_bytes = 2 if low_precision else 4
    bytes_per_lane = 2 * c * elem_bytes + 1                # yp + ys + int8 label
    if tile_n is None:
        tile_n = max(2048, (4 << 20) // bytes_per_lane)
    hard_cap = max(128, (8 << 20) // bytes_per_lane)       # per-buffer byte cap
    tile_n = max(128, min(tile_n, 65536, hard_cap, _round_up(n, 128)))
    tile_n = _round_up(tile_n, 128)

    num_tiles = pl.cdiv(n, tile_n)
    tiles_per_half = pl.cdiv(num_tiles, 2)
    grid = (2, tiles_per_half)                             # (halves, tiles/half)

    def tile_map(h, j):
        # Clamp the logical tile index so trailing (fully-masked) iterations of
        # the second half re-read an in-bounds tile instead of going OOB; the
        # kernel masks them via the unclamped global index.
        t = jnp.minimum(h * tiles_per_half + j, num_tiles - 1)
        return (0, t)

    per_step_bytes = bytes_per_lane * tile_n
    # Double-buffered inputs + f32 temporaries; keep <= 48 MiB for v7x (64 MiB).
    vmem_limit = int(min(48 << 20, max(16 << 20, 12 * per_step_bytes + (4 << 20))))

    kernel = functools.partial(_loss_kernel, n=n, tile_n=tile_n,
                               tiles_per_half=tiles_per_half)

    out1, outv, outm = pl.pallas_call(
        kernel,
        out_shape=(jax.ShapeDtypeStruct((2, c, 1), jnp.float32),
                   jax.ShapeDtypeStruct((2, c, 1), jnp.float32),
                   jax.ShapeDtypeStruct((2, 1, 1), jnp.float32)),
        grid=grid,
        in_specs=[
            pl.BlockSpec((c, tile_n), tile_map),   # y_pred  (C, N) tiles
            pl.BlockSpec((1, tile_n), tile_map),   # labels  (1, N) tiles (int8)
            pl.BlockSpec((c, tile_n), tile_map),   # sorted y_pred tiles
        ],
        out_specs=(
            pl.BlockSpec((1, c, 1), lambda h, j: (h, 0, 0)),
            pl.BlockSpec((1, c, 1), lambda h, j: (h, 0, 0)),
            pl.BlockSpec((1, 1, 1), lambda h, j: (h, 0, 0)),
        ),
        scratch_shapes=[
            pltpu.VMEM((c, 1), jnp.float32),   # sum clamp(log p), y==1 lanes
            pltpu.VMEM((c, 1), jnp.float32),   # sum merged over valid lanes
            pltpu.VMEM((1, 1), jnp.float32),   # monotonic penalty partial sum
            pltpu.VMEM((c, 1), jnp.float32),   # previous tile's last sorted column
        ],
        compiler_params=pltpu.CompilerParams(
            dimension_semantics=("parallel", "arbitrary"),
            vmem_limit_bytes=vmem_limit),
    )(yp_t, yt_row, ys_t)

    # ---- Combine the two per-half partials on the host side -----------------
    sum1 = jnp.sum(out1[:, :, 0], axis=0)                  # (C,)
    sumv = jnp.sum(outv[:, :, 0], axis=0)                  # (C,)
    sum0 = sumv - sum1
    mono = jnp.sum(outm)

    # Cross-half seam pair (b-1, b); b is static so this is plain Python logic.
    b = tiles_per_half * tile_n
    if b < n:
        seam = ys_t[:, b - 1].astype(jnp.float32) - ys_t[:, b].astype(jnp.float32)
        mono = mono + jnp.sum(jnp.maximum(seam, 0.0))

    n1 = jnp.sum((yt_flat == 1).astype(jnp.float32))
    n0 = jnp.sum((yt_flat == 0).astype(jnp.float32))
    loss = (-alpha) * (sum1 / n1) - (1.0 - alpha) * (sum0 / n0) + gamma * mono
    return loss


def _reference(x, y_pred, y_true, alpha, gamma):
    """Pure-JAX reference mirroring the torch semantics (masked-mean form)."""
    yt = y_true.reshape(-1)
    mask1 = yt == 1
    mask0 = yt == 0
    yp = y_pred.astype(jnp.float32)
    logit1 = jnp.maximum(jnp.log(yp), -100.0)
    logit0 = jnp.maximum(jnp.log(1.0 - yp), -100.0)
    m1 = jnp.sum(jnp.where(mask1[:, None], logit1, 0.0), axis=0) / jnp.sum(mask1)
    m0 = jnp.sum(jnp.where(mask0[:, None], logit0, 0.0), axis=0) / jnp.sum(mask0)
    loss_bce = -alpha * m1 - (1.0 - alpha) * m0
    ix = jnp.argsort(x.reshape(-1))
    ys = yp[ix, :]
    first_diff = ys[:-1, :] - ys[1:, :]
    loss_mono = jnp.sum(jnp.maximum(first_diff, 0.0))
    return loss_bce + gamma * loss_mono


if __name__ == "__main__":
    ALPHA, GAMMA = 0.25, 100.0

    def make_inputs(key, n, c):
        k1, k2, k3 = jax.random.split(key, 3)
        y_pred = jax.random.uniform(k1, (n, c), jnp.float32, minval=0.01, maxval=0.99)
        y_true = jax.random.bernoulli(k2, 0.5, (n, 1)).astype(jnp.float32)
        y_true = y_true.at[0, 0].set(0.0).at[1, 0].set(1.0)   # both classes present
        x = jax.random.normal(k3, (n, 1), jnp.float32)
        return x, y_pred, y_true

    key = jax.random.PRNGKey(0)
    ka, kb = jax.random.split(key)

    # Case 1: small, single real tile + one fully-masked duplicate tile, bf16 path.
    x, y_pred, y_true = make_inputs(ka, 64, 8)
    out = jax.block_until_ready(
        loss_bce_monotonic_alpha(x, y_pred, y_true, alpha=ALPHA, gamma=GAMMA))
    yp_q = y_pred.astype(jnp.bfloat16).astype(jnp.float32)   # kernel quantizes inputs
    ref = _reference(x, yp_q, y_true, ALPHA, GAMMA)
    assert out.shape == (8,)
    assert jnp.allclose(out, ref, rtol=1e-5, atol=1e-4), (out, ref)

    # Case 2: multi-tile (ragged last tile, in-half seams, cross-half seam), f32 path.
    x, y_pred, y_true = make_inputs(kb, 1000, 8)
    out = jax.block_until_ready(
        loss_bce_monotonic_alpha(x, y_pred, y_true, alpha=ALPHA, gamma=GAMMA,
                                 low_precision=False, tile_n=256))
    ref = _reference(x, y_pred, y_true, ALPHA, GAMMA)
    assert jnp.allclose(out, ref, rtol=1e-5, atol=1e-4), (out, ref)

    # Case 3: same multi-tile shapes through the default bf16/int8 path.
    out = jax.block_until_ready(
        loss_bce_monotonic_alpha(x, y_pred, y_true, alpha=ALPHA, gamma=GAMMA,
                                 tile_n=256))
    yp_q = y_pred.astype(jnp.bfloat16).astype(jnp.float32)
    ref = _reference(x, yp_q, y_true, ALPHA, GAMMA)
    assert jnp.allclose(out, ref, rtol=1e-5, atol=1e-4), (out, ref)

    print("KERNEL_OK")
</pallas_src>

<mosaic_0001>
module attributes {stable_mosaic.version = 11 : i64} {
  func.func @_loss_kernel(%arg0: i32, %arg1: i32, %arg2: memref<8x128xbf16, #tpu.memory_space<vmem>>, %arg3: memref<1x128xi8, #tpu.memory_space<vmem>>, %arg4: memref<8x128xbf16, #tpu.memory_space<vmem>>, %arg5: memref<1x8x1xf32, #tpu.memory_space<vmem>>, %arg6: memref<1x8x1xf32, #tpu.memory_space<vmem>>, %arg7: memref<1x1x1xf32, #tpu.memory_space<vmem>>, %arg8: memref<8x1xf32, #tpu.memory_space<vmem>>, %arg9: memref<8x1xf32, #tpu.memory_space<vmem>>, %arg10: memref<1x1xf32, #tpu.memory_space<vmem>>, %arg11: memref<8x1xf32, #tpu.memory_space<vmem>>) attributes {dimension_semantics = [#tpu.dimension_semantics<parallel>, #tpu.dimension_semantics<arbitrary>], iteration_bounds = array<i64: 2, 1>, scalar_prefetch = 0 : i64, scratch_operands = 4 : i64, tpu.core_type = #tpu.core_type<tc>, window_params = [{transform_indices = @transform_0, window_bounds = array<i64: 8, 128>}, {transform_indices = @transform_1, window_bounds = array<i64: 1, 128>}, {transform_indices = @transform_2, window_bounds = array<i64: 8, 128>}, {transform_indices = @transform_3, window_bounds = array<i64: 1, 8, 1>}, {transform_indices = @transform_4, window_bounds = array<i64: 1, 8, 1>}, {transform_indices = @transform_5, window_bounds = array<i64: 1, 1, 1>}]} {
    %c0_i32 = arith.constant 0 : i32
    %0 = arith.cmpi eq, %arg1, %c0_i32 : i32
    %1 = arith.extui %0 : i1 to i32
    %c0_i32_0 = arith.constant 0 : i32
    %2 = arith.cmpi ne, %1, %c0_i32_0 : i32
    scf.if %2 {
      %cst_37 = arith.constant 0.000000e+00 : f32
      %79 = vector.broadcast %cst_37 : f32 to vector<8x1xf32>
      %c0_38 = arith.constant 0 : index
      %c0_39 = arith.constant 0 : index
      %80 = vector.load %arg8[%c0_38, %c0_39] : memref<8x1xf32, #tpu.memory_space<vmem>>, vector<8x1xf32>
      tpu.vector_store %arg8[%c0_38, %c0_39], %79 {strides = array<i32>} : memref<8x1xf32, #tpu.memory_space<vmem>>, vector<8x1xf32>,
      %cst_40 = arith.constant 0.000000e+00 : f32
      %81 = vector.broadcast %cst_40 : f32 to vector<8x1xf32>
      %c0_41 = arith.constant 0 : index
      %c0_42 = arith.constant 0 : index
      %82 = vector.load %arg9[%c0_41, %c0_42] : memref<8x1xf32, #tpu.memory_space<vmem>>, vector<8x1xf32>
      tpu.vector_store %arg9[%c0_41, %c0_42], %81 {strides = array<i32>} : memref<8x1xf32, #tpu.memory_space<vmem>>, vector<8x1xf32>,
      %cst_43 = arith.constant 0.000000e+00 : f32
      %83 = vector.broadcast %cst_43 : f32 to vector<1x1xf32>
      %c0_44 = arith.constant 0 : index
      %c0_45 = arith.constant 0 : index
      %84 = vector.load %arg10[%c0_44, %c0_45] : memref<1x1xf32, #tpu.memory_space<vmem>>, vector<1x1xf32>
      tpu.vector_store %arg10[%c0_44, %c0_45], %83 {strides = array<i32>} : memref<1x1xf32, #tpu.memory_space<vmem>>, vector<1x1xf32>,
    } else {
    }
    %c1_i32 = arith.constant 1 : i32
    %3 = arith.muli %arg0, %c1_i32 : i32
    %4 = arith.addi %3, %arg1 : i32
    %c128_i32 = arith.constant 128 : i32
    %5 = arith.muli %4, %c128_i32 : i32
    %6 = tpu.iota {dimensions = array<i32: 1>} : vector<1x128xi32>
    %7 = vector.broadcast %5 : i32 to vector<1x128xi32>
    %8 = arith.addi %7, %6 : vector<1x128xi32>
    %c64_i32 = arith.constant 64 : i32
    %9 = vector.broadcast %c64_i32 : i32 to vector<1x128xi32>
    %10 = arith.cmpi slt, %8, %9 : vector<1x128xi32>
    %c0 = arith.constant 0 : index
    %c0_1 = arith.constant 0 : index
    %11 = vector.load %arg2[%c0, %c0_1] : memref<8x128xbf16, #tpu.memory_space<vmem>>, vector<8x128xbf16>
    %12 = arith.extf %11 : vector<8x128xbf16> to vector<8x128xf32>
    %c0_2 = arith.constant 0 : index
    %c0_3 = arith.constant 0 : index
    %13 = vector.load %arg4[%c0_2, %c0_3] : memref<8x128xbf16, #tpu.memory_space<vmem>>, vector<8x128xbf16>
    %14 = arith.extf %13 : vector<8x128xbf16> to vector<8x128xf32>
    %c0_4 = arith.constant 0 : index
    %c0_5 = arith.constant 0 : index
    %15 = vector.load %arg3[%c0_4, %c0_5] : memref<1x128xi8, #tpu.memory_space<vmem>>, vector<1x128xi8>
    %16 = arith.extsi %15 : vector<1x128xi8> to vector<1x128xi32>
    %c1_i32_6 = arith.constant 1 : i32
    %17 = vector.broadcast %c1_i32_6 : i32 to vector<1x128xi32>
    %18 = arith.cmpi eq, %16, %17 : vector<1x128xi32>
    %19 = arith.andi %18, %10 : vector<1x128xi1>
    %c0_i32_7 = arith.constant 0 : i32
    %20 = vector.broadcast %c0_i32_7 : i32 to vector<1x128xi32>
    %21 = arith.cmpi eq, %16, %20 : vector<1x128xi32>
    %22 = arith.andi %21, %10 : vector<1x128xi1>
    %23 = arith.ori %19, %22 : vector<1x128xi1>
    %cst = arith.constant 1.000000e+00 : f32
    %24 = vector.broadcast %cst : f32 to vector<8x128xf32>
    %25 = arith.subf %24, %12 : vector<8x128xf32>
    %26 = vector.shape_cast %19 : vector<1x128xi1> to vector<1x128xi1>
    %27 = vector.broadcast %26 : vector<1x128xi1> to vector<8x128xi1>
    %28 = arith.select %27, %12, %25 : vector<8x128xi1>, vector<8x128xf32>
    %29 = math.log %28 : vector<8x128xf32>
    %cst_8 = arith.constant -1.000000e+02 : f32
    %30 = vector.broadcast %cst_8 : f32 to vector<8x128xf32>
    %31 = arith.maximumf %29, %30 : vector<8x128xf32>
    %c0_9 = arith.constant 0 : index
    %c0_10 = arith.constant 0 : index
    %32 = vector.load %arg8[%c0_9, %c0_10] : memref<8x1xf32, #tpu.memory_space<vmem>>, vector<8x1xf32>
    %cst_11 = arith.constant 0.000000e+00 : f32
    %33 = vector.shape_cast %19 : vector<1x128xi1> to vector<1x128xi1>
    %34 = vector.broadcast %33 : vector<1x128xi1> to vector<8x128xi1>
    %35 = vector.broadcast %cst_11 : f32 to vector<8x128xf32>
    %36 = arith.select %34, %31, %35 : vector<8x128xi1>, vector<8x128xf32>
    %cst_12 = arith.constant dense<0.000000e+00> : vector<8xf32>
    %37 = vector.multi_reduction <add>, %36, %cst_12 [1] : vector<8x128xf32> to vector<8xf32>
    %38 = vector.shape_cast %37 : vector<8xf32> to vector<8x1xf32>
    %39 = arith.addf %32, %38 : vector<8x1xf32>
    %c0_13 = arith.constant 0 : index
    %c0_14 = arith.constant 0 : index
    %40 = vector.load %arg8[%c0_13, %c0_14] : memref<8x1xf32, #tpu.memory_space<vmem>>, vector<8x1xf32>
    tpu.vector_store %arg8[%c0_13, %c0_14], %39 {strides = array<i32>} : memref<8x1xf32, #tpu.memory_space<vmem>>, vector<8x1xf32>,
    %c0_15 = arith.constant 0 : index
    %c0_16 = arith.constant 0 : index
    %41 = vector.load %arg9[%c0_15, %c0_16] : memref<8x1xf32, #tpu.memory_space<vmem>>, vector<8x1xf32>
    %cst_17 = arith.constant 0.000000e+00 : f32
    %42 = vector.shape_cast %23 : vector<1x128xi1> to vector<1x128xi1>
    %43 = vector.broadcast %42 : vector<1x128xi1> to vector<8x128xi1>
    %44 = vector.broadcast %cst_17 : f32 to vector<8x128xf32>
    %45 = arith.select %43, %31, %44 : vector<8x128xi1>, vector<8x128xf32>
    %cst_18 = arith.constant dense<0.000000e+00> : vector<8xf32>
    %46 = vector.multi_reduction <add>, %45, %cst_18 [1] : vector<8x128xf32> to vector<8xf32>
    %47 = vector.shape_cast %46 : vector<8xf32> to vector<8x1xf32>
    %48 = arith.addf %41, %47 : vector<8x1xf32>
    %c0_19 = arith.constant 0 : index
    %c0_20 = arith.constant 0 : index
    %49 = vector.load %arg9[%c0_19, %c0_20] : memref<8x1xf32, #tpu.memory_space<vmem>>, vector<8x1xf32>
    tpu.vector_store %arg9[%c0_19, %c0_20], %48 {strides = array<i32>} : memref<8x1xf32, #tpu.memory_space<vmem>>, vector<8x1xf32>,
    %c1_i32_21 = arith.constant 1 : i32
    %50 = tpu.dynamic_rotate %14 by %c1_i32_21 dim 1 : vector<8x128xf32>, i32 -> vector<8x128xf32>
    %51 = arith.subf %50, %14 : vector<8x128xf32>
    %c0_i32_22 = arith.constant 0 : i32
    %52 = vector.broadcast %c0_i32_22 : i32 to vector<1x128xi32>
    %53 = arith.cmpi sgt, %6, %52 : vector<1x128xi32>
    %54 = arith.andi %53, %10 : vector<1x128xi1>
    %c0_23 = arith.constant 0 : index
    %c0_24 = arith.constant 0 : index
    %55 = vector.load %arg10[%c0_23, %c0_24] : memref<1x1xf32, #tpu.memory_space<vmem>>, vector<1x1xf32>
    %cst_25 = arith.constant 0.000000e+00 : f32
    %56 = vector.broadcast %cst_25 : f32 to vector<8x128xf32>
    %57 = arith.maximumf %51, %56 : vector<8x128xf32>
    %cst_26 = arith.constant 0.000000e+00 : f32
    %58 = vector.shape_cast %54 : vector<1x128xi1> to vector<1x128xi1>
    %59 = vector.broadcast %58 : vector<1x128xi1> to vector<8x128xi1>
    %60 = vector.broadcast %cst_26 : f32 to vector<8x128xf32>
    %61 = arith.select %59, %57, %60 : vector<8x128xi1>, vector<8x128xf32>
    %62 = vector.shape_cast %61 : vector<8x128xf32> to vector<1x8x128xf32>
    %cst_27 = arith.constant dense<0.000000e+00> : vector<1xf32>
    %63 = vector.multi_reduction <add>, %62, %cst_27 [1, 2] : vector<1x8x128xf32> to vector<1xf32>
    %64 = vector.shape_cast %63 : vector<1xf32> to vector<1x1x1xf32>
    %65 = vector.extract %64[0, 0, 0] : f32 from vector<1x1x1xf32>
    %66 = vector.broadcast %65 : f32 to vector<1x1xf32>
    %67 = arith.addf %55, %66 : vector<1x1xf32>
    %c0_28 = arith.constant 0 : index
    %c0_29 = arith.constant 0 : index
    %68 = vector.load %arg10[%c0_28, %c0_29] : memref<1x1xf32, #tpu.memory_space<vmem>>, vector<1x1xf32>
    tpu.vector_store %arg10[%c0_28, %c0_29], %67 {strides = array<i32>} : memref<1x1xf32, #tpu.memory_space<vmem>>, vector<1x1xf32>,
    %c0_i32_30 = arith.constant 0 : i32
    %69 = arith.cmpi sgt, %arg1, %c0_i32_30 : i32
    %c64_i32_31 = arith.constant 64 : i32
    %70 = arith.cmpi slt, %5, %c64_i32_31 : i32
    %71 = arith.andi %69, %70 : i1
    %72 = arith.extui %71 : i1 to i32
    %c0_i32_32 = arith.constant 0 : i32
    %73 = arith.cmpi ne, %72, %c0_i32_32 : i32
    scf.if %73 {
      %c0_37 = arith.constant 0 : index
      %c0_38 = arith.constant 0 : index
      %79 = vector.load %arg11[%c0_37, %c0_38] : memref<8x1xf32, #tpu.memory_space<vmem>>, vector<8x1xf32>
      %80 = vector.extract_strided_slice %14 {offsets = [0, 0], sizes = [8, 1], strides = [1, 1]} : vector<8x128xf32> to vector<8x1xf32>
      %81 = arith.subf %79, %80 : vector<8x1xf32>
      %c0_39 = arith.constant 0 : index
      %c0_40 = arith.constant 0 : index
      %82 = vector.load %arg10[%c0_39, %c0_40] : memref<1x1xf32, #tpu.memory_space<vmem>>, vector<1x1xf32>
      %cst_41 = arith.constant 0.000000e+00 : f32
      %83 = vector.broadcast %cst_41 : f32 to vector<8x1xf32>
      %84 = arith.maximumf %81, %83 : vector<8x1xf32>
      %85 = vector.shape_cast %84 : vector<8x1xf32> to vector<1x8x1xf32>
      %cst_42 = arith.constant dense<0.000000e+00> : vector<1xf32>
      %86 = vector.multi_reduction <add>, %85, %cst_42 [1, 2] : vector<1x8x1xf32> to vector<1xf32>
      %87 = vector.shape_cast %86 : vector<1xf32> to vector<1x1x1xf32>
      %88 = vector.extract %87[0, 0, 0] : f32 from vector<1x1x1xf32>
      %89 = vector.broadcast %88 : f32 to vector<1x1xf32>
      %90 = arith.addf %82, %89 : vector<1x1xf32>
      %c0_43 = arith.constant 0 : index
      %c0_44 = arith.constant 0 : index
      %91 = vector.load %arg10[%c0_43, %c0_44] : memref<1x1xf32, #tpu.memory_space<vmem>>, vector<1x1xf32>
      tpu.vector_store %arg10[%c0_43, %c0_44], %90 {strides = array<i32>} : memref<1x1xf32, #tpu.memory_space<vmem>>, vector<1x1xf32>,
    } else {
    }
    %74 = vector.extract_strided_slice %14 {offsets = [0, 127], sizes = [8, 1], strides = [1, 1]} : vector<8x128xf32> to vector<8x1xf32>
    %c0_33 = arith.constant 0 : index
    %c0_34 = arith.constant 0 : index
    %75 = vector.load %arg11[%c0_33, %c0_34] : memref<8x1xf32, #tpu.memory_space<vmem>>, vector<8x1xf32>
    tpu.vector_store %arg11[%c0_33, %c0_34], %74 {strides = array<i32>} : memref<8x1xf32, #tpu.memory_space<vmem>>, vector<8x1xf32>,
    %c0_i32_35 = arith.constant 0 : i32
    %76 = arith.cmpi eq, %arg1, %c0_i32_35 : i32
    %77 = arith.extui %76 : i1 to i32
    %c0_i32_36 = arith.constant 0 : i32
    %78 = arith.cmpi ne, %77, %c0_i32_36 : i32
    scf.if %78 {
      %c0_37 = arith.constant 0 : index
      %c0_38 = arith.constant 0 : index
      %79 = vector.load %arg8[%c0_37, %c0_38] : memref<8x1xf32, #tpu.memory_space<vmem>>, vector<8x1xf32>
      %80 = vector.shape_cast %79 : vector<8x1xf32> to vector<1x8x1xf32>
      %c0_39 = arith.constant 0 : index
      %c0_40 = arith.constant 0 : index
      %c0_41 = arith.constant 0 : index
      %81 = vector.load %arg5[%c0_39, %c0_40, %c0_41] : memref<1x8x1xf32, #tpu.memory_space<vmem>>, vector<1x8x1xf32>
      tpu.vector_store %arg5[%c0_39, %c0_40, %c0_41], %80 {strides = array<i32>} : memref<1x8x1xf32, #tpu.memory_space<vmem>>, vector<1x8x1xf32>,
      %c0_42 = arith.constant 0 : index
      %c0_43 = arith.constant 0 : index
      %82 = vector.load %arg9[%c0_42, %c0_43] : memref<8x1xf32, #tpu.memory_space<vmem>>, vector<8x1xf32>
      %83 = vector.shape_cast %82 : vector<8x1xf32> to vector<1x8x1xf32>
      %c0_44 = arith.constant 0 : index
      %c0_45 = arith.constant 0 : index
      %c0_46 = arith.constant 0 : index
      %84 = vector.load %arg6[%c0_44, %c0_45, %c0_46] : memref<1x8x1xf32, #tpu.memory_space<vmem>>, vector<1x8x1xf32>
      tpu.vector_store %arg6[%c0_44, %c0_45, %c0_46], %83 {strides = array<i32>} : memref<1x8x1xf32, #tpu.memory_space<vmem>>, vector<1x8x1xf32>,
      %c0_47 = arith.constant 0 : index
      %c0_48 = arith.constant 0 : index
      %85 = vector.load %arg10[%c0_47, %c0_48] : memref<1x1xf32, #tpu.memory_space<vmem>>, vector<1x1xf32>
      %86 = vector.shape_cast %85 : vector<1x1xf32> to vector<1x1x1xf32>
      %c0_49 = arith.constant 0 : index
      %c0_50 = arith.constant 0 : index
      %c0_51 = arith.constant 0 : index
      %87 = vector.load %arg7[%c0_49, %c0_50, %c0_51] : memref<1x1x1xf32, #tpu.memory_space<vmem>>, vector<1x1x1xf32>
      tpu.vector_store %arg7[%c0_49, %c0_50, %c0_51], %86 {strides = array<i32>} : memref<1x1x1xf32, #tpu.memory_space<vmem>>, vector<1x1x1xf32>,
    } else {
    }
    return
  }
  func.func @transform_0(%arg0: i32, %arg1: i32) -> (i32, i32) {
    %c1_i32 = arith.constant 1 : i32
    %0 = arith.muli %arg0, %c1_i32 : i32
    %1 = arith.addi %0, %arg1 : i32
    %c0_i32 = arith.constant 0 : i32
    %2 = arith.minsi %1, %c0_i32 : i32
    %c0_i32_0 = arith.constant 0 : i32
    %c0_i32_1 = arith.constant 0 : i32
    return %c0_i32_0, %2 : i32, i32
  }
  func.func @transform_1(%arg0: i32, %arg1: i32) -> (i32, i32) {
    %c1_i32 = arith.constant 1 : i32
    %0 = arith.muli %arg0, %c1_i32 : i32
    %1 = arith.addi %0, %arg1 : i32
    %c0_i32 = arith.constant 0 : i32
    %2 = arith.minsi %1, %c0_i32 : i32
    %c0_i32_0 = arith.constant 0 : i32
    %c0_i32_1 = arith.constant 0 : i32
    return %c0_i32_0, %2 : i32, i32
  }
  func.func @transform_2(%arg0: i32, %arg1: i32) -> (i32, i32) {
    %c1_i32 = arith.constant 1 : i32
    %0 = arith.muli %arg0, %c1_i32 : i32
    %1 = arith.addi %0, %arg1 : i32
    %c0_i32 = arith.constant 0 : i32
    %2 = arith.minsi %1, %c0_i32 : i32
    %c0_i32_0 = arith.constant 0 : i32
    %c0_i32_1 = arith.constant 0 : i32
    return %c0_i32_0, %2 : i32, i32
  }
  func.func @transform_3(%arg0: i32, %arg1: i32) -> (i32, i32, i32) {
    %c0_i32 = arith.constant 0 : i32
    %c0_i32_0 = arith.constant 0 : i32
    %c0_i32_1 = arith.constant 0 : i32
    return %arg0, %c0_i32, %c0_i32_0 : i32, i32, i32
  }
  func.func @transform_4(%arg0: i32, %arg1: i32) -> (i32, i32, i32) {
    %c0_i32 = arith.constant 0 : i32
    %c0_i32_0 = arith.constant 0 : i32
    %c0_i32_1 = arith.constant 0 : i32
    return %arg0, %c0_i32, %c0_i32_0 : i32, i32, i32
  }
  func.func @transform_5(%arg0: i32, %arg1: i32) -> (i32, i32, i32) {
    %c0_i32 = arith.constant 0 : i32
    %c0_i32_0 = arith.constant 0 : i32
    %c0_i32_1 = arith.constant 0 : i32
    return %arg0, %c0_i32, %c0_i32_0 : i32, i32, i32
  }
}

</mosaic_0001>

<llo_original>
// kernel: tpu_custom_call.1
$region0: #{tpu_custom_call.1}
  #allocation0 [shape = 'u32[]', space=smem, size = 0x4, offset = 0x4, fixed_abs, tag = 'smem constant byte address 0x4 - core index']
  #allocation1 [shape = 'u32[144,128]{1,0:T(1,128)}', space=vmem, size = 0x12000, scoped, tag = 'internal scratch']
  #allocation2 [shape = 'f32[8,1]{1,0:T(8,128)}', space=vmem, size = 0x1000, scoped, tag = 'scratch operand']
  #allocation3 [shape = 'f32[8,1]{1,0:T(8,128)}', space=vmem, size = 0x1000, scoped, tag = 'scratch operand']
  #allocation4 [shape = 'f32[1,1]{1,0:T(1,128)}', space=vmem, size = 0x200, scoped, tag = 'scratch operand']
  #allocation5 [shape = 'f32[8,1]{1,0:T(8,128)}', space=vmem, size = 0x1000, scoped, tag = 'scratch operand']
  %s0 = inlined_call_operand.hbm [shape: bf16[8,64], index: 0, kind: input, shape index: {}]
  %s1 = inlined_call_operand.vmem [shape: s8[1,64], index: 1, kind: input, shape index: {}]
  %s2 = inlined_call_operand.hbm [shape: bf16[8,64], index: 2, kind: input, shape index: {}]
  %s3 = inlined_call_operand.vmem [shape: f32[2,8,1], index: 3, kind: output, shape index: {0}]
  %s4 = inlined_call_operand.vmem [shape: f32[2,8,1], index: 4, kind: output, shape index: {1}]
  %s5 = inlined_call_operand.vmem [shape: f32[2,1,1], index: 5, kind: output, shape index: {2}]
  %6 = xla_tuple %s3, %s4, %s5
  %s7 = sld [smem:[#allocation0]]
  $region81: #{tpu_custom_call.1} parent=0
    _
  %s9 = ssub.s32 1, %s7
  %s10 = scalar_select 0, %s9, %s7
  $region1: #{tpu_custom_call.1} parent=0
    #allocation6 [shape = 'u8[4096]{0}', space=vmem, size = 0x1000, scoped, tag = 'input window, operand 0']
    #allocation7 [shape = 's32[2]{0}', space=sflag, size = 0x8, scoped, tag = 'scoped memory for tpu_custom_call.1']
    #allocation8 [shape = 'u8[4096]{0}', space=vmem, size = 0x1000, scoped, tag = 'input window, operand 2']
    #allocation9 [shape = 's32[2]{0}', space=sflag, size = 0x8, scoped, tag = 'scoped memory for tpu_custom_call.1']
    %11 = vsyncpa [#allocation7], 0
    %s12 = scalar_lea.sflag [#allocation7], 1
    %13 = vsyncpa %s12, 0
    %14 = vsyncpa [#allocation9], 0
    %s15 = scalar_lea.sflag [#allocation9], 1
    %16 = vsyncpa %s15, 0
    loop: start=0, step=1, limit=4
    $region2: #{tpu_custom_call.1} parent=1 // loop_pre_header
      _
    $region3: #{tpu_custom_call.1} parent=1 // loop_header
      %s18 = sphi 0, %s22
      %p19 = scmp.ge.s32.totalorder %s18, 4
      %s25 = sphi 0, %s37
      %s26 = sphi 0, %s33
      %s27 = sphi 0, %s25
      %s28 = sphi 0, %s26
      %s29 = sphi 0, %s27
      %s30 = sphi 0, %s28
      %s46 = sphi 0, %s48
      %s49 = sphi 0, %s46
      %s50 = sphi 0, %s49
      %s66 = sphi 0, %s50
      %s78 = sphi 0, %s80
      %s81 = sphi 0, %s78
      %s82 = sphi 0, %s81
      %s98 = sphi 0, %s82
      %s110 = sphi 0, %s112
      %s113 = sphi 0, %s110
      %s114 = sphi 0, %s113
      %s130 = sphi 0, %s114
      %s136 = sphi 0, %s138
      %s139 = sphi 0, %s136
      %s140 = sphi 0, %s139
      %s156 = sphi 0, %s140
      %s162 = sphi 0, %s164
      %s165 = sphi 0, %s162
      %s166 = sphi 0, %s165
      %s182 = sphi 0, %s166
      %s188 = sphi 0, %s190
      %s191 = sphi 0, %s188
      %s192 = sphi 0, %s191
      %s208 = sphi 0, %s192
    $region4: #{tpu_custom_call.1} parent=1 // loop_header_branch
      %21 = sbr.rel (%p19) target = $region8
    $region5: #{tpu_custom_call.1} parent=1 // loop_body
      %s23 = ssub.s32 %s18, 1
      %s24 = ssub.s32 %s18, 2
      %s31 = sadd.s32 1, %s26
      %p32 = scmp.ge.s32.totalorder %s31, 1
      %s33 = scalar_select %p32, 0, %s31
      %s34 = sadd.s32 1, %s25
      %s35 = scalar_select %p32, %s34, %s25
      %p36 = scmp.ge.s32.totalorder %s35, 2
      %s37 = scalar_select %p36, 0, %s35
      %s38 = sadd.s32 %s25, %s26
      %p39 = scmp.lt.s32.totalorder %s38, 0
      %s40 = scalar_select %p39, %s38, 0
      %s41 = sadd.s32 %s37, %s33
      %p42 = scmp.lt.s32.totalorder %s41, 0
      %s43 = scalar_select %p42, %s41, 0
      %s44 = ssub.s32 %s40, %s43
      %p45 = scmp.eq.s32.totalorder %s44, 0
      %s47 = sadd.s32 %s46, 1
      %s48 = scalar_select %p45, %s46, %s47
      %p51 = pneg %p45
      %p52 = scmp.eq.s32.totalorder %s18, 1
      %p53 = por %p51, %p52
      %p54 = scmp.ne.s32.totalorder %s46, %s49
      %p55 = scmp.eq.s32.totalorder %s18, 0
      %p56 = por %p54, %p55
      %p57 = scmp.ne.s32.totalorder %s46, %s49
      %p58 = scmp.eq.s32.totalorder %s23, 1
      %p59 = por %p57, %p58
      %p60 = scmp.ne.s32.totalorder %s49, %s50
      %p61 = scmp.eq.s32.totalorder %s23, 0
      %p62 = por %p60, %p61
      %p63 = scmp.ne.s32.totalorder %s49, %s50
      %p64 = scmp.eq.s32.totalorder %s24, 1
      %p65 = por %p63, %p64
      %p67 = scmp.ne.s32.totalorder %s50, %s66
      %p68 = scmp.eq.s32.totalorder %s24, 0
      %p69 = por %p67, %p68
      %s70 = sadd.s32 %s25, %s26
      %p71 = scmp.lt.s32.totalorder %s70, 0
      %s72 = scalar_select %p71, %s70, 0
      %s73 = sadd.s32 %s37, %s33
      %p74 = scmp.lt.s32.totalorder %s73, 0
      %s75 = scalar_select %p74, %s73, 0
      %s76 = ssub.s32 %s72, %s75
      %p77 = scmp.eq.s32.totalorder %s76, 0
      %s79 = sadd.s32 %s78, 1
      %s80 = scalar_select %p77, %s78, %s79
      %p83 = pneg %p77
      %p84 = scmp.eq.s32.totalorder %s18, 1
      %p85 = por %p83, %p84
      %p86 = scmp.ne.s32.totalorder %s78, %s81
      %p87 = scmp.eq.s32.totalorder %s18, 0
      %p88 = por %p86, %p87
      %p89 = scmp.ne.s32.totalorder %s78, %s81
      %p90 = scmp.eq.s32.totalorder %s23, 1
      %p91 = por %p89, %p90
      %p92 = scmp.ne.s32.totalorder %s81, %s82
      %p93 = scmp.eq.s32.totalorder %s23, 0
      %p94 = por %p92, %p93
      %p95 = scmp.ne.s32.totalorder %s81, %s82
      %p96 = scmp.eq.s32.totalorder %s24, 1
      %p97 = por %p95, %p96
      %p99 = scmp.ne.s32.totalorder %s82, %s98
      %p100 = scmp.eq.s32.totalorder %s24, 0
      %p101 = por %p99, %p100
      %s102 = sadd.s32 %s25, %s26
      %p103 = scmp.lt.s32.totalorder %s102, 0
      %s104 = scalar_select %p103, %s102, 0
      %s105 = sadd.s32 %s37, %s33
      %p106 = scmp.lt.s32.totalorder %s105, 0
      %s107 = scalar_select %p106, %s105, 0
      %s108 = ssub.s32 %s104, %s107
      %p109 = scmp.eq.s32.totalorder %s108, 0
      %s111 = sadd.s32 %s110, 1
      %s112 = scalar_select %p109, %s110, %s111
      %p115 = pneg %p109
      %p116 = scmp.eq.s32.totalorder %s18, 1
      %p117 = por %p115, %p116
      %p118 = scmp.ne.s32.totalorder %s110, %s113
      %p119 = scmp.eq.s32.totalorder %s18, 0
      %p120 = por %p118, %p119
      %p121 = scmp.ne.s32.totalorder %s110, %s113
      %p122 = scmp.eq.s32.totalorder %s23, 1
      %p123 = por %p121, %p122
      %p124 = scmp.ne.s32.totalorder %s113, %s114
      %p125 = scmp.eq.s32.totalorder %s23, 0
      %p126 = por %p124, %p125
      %p127 = scmp.ne.s32.totalorder %s113, %s114
      %p128 = scmp.eq.s32.totalorder %s24, 1
      %p129 = por %p127, %p128
      %p131 = scmp.ne.s32.totalorder %s114, %s130
      %p132 = scmp.eq.s32.totalorder %s24, 0
      %p133 = por %p131, %p132
      %s134 = ssub.s32 %s25, %s37
      %p135 = scmp.eq.s32.totalorder %s134, 0
      %s137 = sadd.s32 %s136, 1
      %s138 = scalar_select %p135, %s136, %s137
      %p141 = pneg %p135
      %p142 = scmp.eq.s32.totalorder %s18, 1
      %p143 = por %p141, %p142
      %p144 = scmp.ne.s32.totalorder %s136, %s139
      %p145 = scmp.eq.s32.totalorder %s18, 0
      %p146 = por %p144, %p145
      %p147 = scmp.ne.s32.totalorder %s136, %s139
      %p148 = scmp.eq.s32.totalorder %s23, 1
      %p149 = por %p147, %p148
      %p150 = scmp.ne.s32.totalorder %s139, %s140
      %p151 = scmp.eq.s32.totalorder %s23, 0
      %p152 = por %p150, %p151
      %p153 = scmp.ne.s32.totalorder %s139, %s140
      %p154 = scmp.eq.s32.totalorder %s24, 1
      %p155 = por %p153, %p154
      %p157 = scmp.ne.s32.totalorder %s140, %s156
      %p158 = scmp.eq.s32.totalorder %s24, 0
      %p159 = por %p157, %p158
      %s160 = ssub.s32 %s25, %s37
      %p161 = scmp.eq.s32.totalorder %s160, 0
      %s163 = sadd.s32 %s162, 1
      %s164 = scalar_select %p161, %s162, %s163
      %p167 = pneg %p161
      %p168 = scmp.eq.s32.totalorder %s18, 1
      %p169 = por %p167, %p168
      %p170 = scmp.ne.s32.totalorder %s162, %s165
      %p171 = scmp.eq.s32.totalorder %s18, 0
      %p172 = por %p170, %p171
      %p173 = scmp.ne.s32.totalorder %s162, %s165
      %p174 = scmp.eq.s32.totalorder %s23, 1
      %p175 = por %p173, %p174
      %p176 = scmp.ne.s32.totalorder %s165, %s166
      %p177 = scmp.eq.s32.totalorder %s23, 0
      %p178 = por %p176, %p177
      %p179 = scmp.ne.s32.totalorder %s165, %s166
      %p180 = scmp.eq.s32.totalorder %s24, 1
      %p181 = por %p179, %p180
      %p183 = scmp.ne.s32.totalorder %s166, %s182
      %p184 = scmp.eq.s32.totalorder %s24, 0
      %p185 = por %p183, %p184
      %s186 = ssub.s32 %s25, %s37
      %p187 = scmp.eq.s32.totalorder %s186, 0
      %s189 = sadd.s32 %s188, 1
      %s190 = scalar_select %p187, %s188, %s189
      %p193 = pneg %p187
      %p194 = scmp.eq.s32.totalorder %s18, 1
      %p195 = por %p193, %p194
      %p196 = scmp.ne.s32.totalorder %s188, %s191
      %p197 = scmp.eq.s32.totalorder %s18, 0
      %p198 = por %p196, %p197
      %p199 = scmp.ne.s32.totalorder %s188, %s191
      %p200 = scmp.eq.s32.totalorder %s23, 1
      %p201 = por %p199, %p200
      %p202 = scmp.ne.s32.totalorder %s191, %s192
      %p203 = scmp.eq.s32.totalorder %s23, 0
      %p204 = por %p202, %p203
      %p205 = scmp.ne.s32.totalorder %s191, %s192
      %p206 = scmp.eq.s32.totalorder %s24, 1
      %p207 = por %p205, %p206
      %p209 = scmp.ne.s32.totalorder %s192, %s208
      %p210 = scmp.eq.s32.totalorder %s24, 0
      %p211 = por %p209, %p210
      %p212 = scmp.le.s32.totalorder 1, %s18
      %p213 = scmp.lt.s32.totalorder %s18, 3
      %p214 = pnand %p212, %p213
      %p215 = pneg %p214
      // Predicated region
      $region9: #{tpu_custom_call.1} parent=5 // pred_check
        _
      $region10: #{tpu_custom_call.1} parent=5 // pred_check_branch
        %217 = sbr.rel (%p214) target = $region12
      $region11: #{tpu_custom_call.1} parent=5 // pred_region
        %s218 = ssub.s32 %s18, 1
      $region12: #{tpu_custom_call.1} parent=5 // pred_fallthru
        _
      %p219 = scmp.lt.s32.totalorder %s18, 2
      // Predicated region
      $region13: #{tpu_custom_call.1} parent=5 // pred_check
        %p220 = pneg %p219
      $region14: #{tpu_custom_call.1} parent=5 // pred_check_branch
        %222 = sbr.rel (%p220) target = $region16
      $region15: #{tpu_custom_call.1} parent=5 // pred_region
        // Predicated region
        $region17: #{tpu_custom_call.1} parent=15 // pred_check
          %p223 = pneg %p56
        $region18: #{tpu_custom_call.1} parent=15 // pred_check_branch
          %225 = sbr.rel (%p223) target = $region20
        $region19: #{tpu_custom_call.1} parent=15 // pred_region
          %s226 = sand.u32 %s46, 1
          %s227 = scalar_lea.sflag [#allocation7], %s226
          %s228 = sand.u32 %s46, 1
          %s229 = smul.addr %s228, 4
          %s230 = scalar_lea.vmem [#allocation6], %s229
          %s231 = sadd.s32 %s25, %s26
          %p232 = scmp.lt.s32.totalorder %s231, 0
          %s233 = scalar_select %p232, %s231, 0
          %s235 = ssub.s32 64, 64
          %236 = vsyncadd %s227, %s235
          %s237 = smul.addr %s233, 64
          %s238 = scalar_lea.hbm %s0, %s237
          %s240 = sshll.u32 %s230, 4
          %s241 = int_to_ptr.vmem [resolvable:$true] %s240
          %243 = dma.hbm_to_vmem [thread:$0]  %s238, 64, %s241, %s227
        $region20: #{tpu_custom_call.1} parent=15 // pred_fallthru
          _
        // Predicated region
        $region21: #{tpu_custom_call.1} parent=15 // pred_check
          %p244 = pneg %p88
        $region22: #{tpu_custom_call.1} parent=15 // pred_check_branch
          %246 = sbr.rel (%p244) target = $region24
        $region23: #{tpu_custom_call.1} parent=15 // pred_region
          %s247 = sadd.s32 %s25, %s26
          %p248 = scmp.lt.s32.totalorder %s247, 0
          %s249 = scalar_select %p248, %s247, 0
          %p250 = scmp.lt.s32.totalorder %s249, 0
          %s251 = scalar_select %p250, %s249, 0
          %s252 = scalar_lea.vmem %s1, %s251
          %s253 = sadd.s32 %s25, %s26
          %p254 = scmp.lt.s32.totalorder %s253, 0
          %s255 = scalar_select %p254, %s253, 0
        $region24: #{tpu_custom_call.1} parent=15 // pred_fallthru
          _
        // Predicated region
        $region25: #{tpu_custom_call.1} parent=15 // pred_check
          %p256 = pneg %p120
        $region26: #{tpu_custom_call.1} parent=15 // pred_check_branch
          %258 = sbr.rel (%p256) target = $region28
        $region27: #{tpu_custom_call.1} parent=15 // pred_region
          %s259 = sand.u32 %s110, 1
          %s260 = scalar_lea.sflag [#allocation9], %s259
          %s261 = sand.u32 %s110, 1
          %s262 = smul.addr %s261, 4
          %s263 = scalar_lea.vmem [#allocation8], %s262
          %s264 = sadd.s32 %s25, %s26
          %p265 = scmp.lt.s32.totalorder %s264, 0
          %s266 = scalar_select %p265, %s264, 0
          %s268 = ssub.s32 64, 64
          %269 = vsyncadd %s260, %s268
          %s270 = smul.addr %s266, 64
          %s271 = scalar_lea.hbm %s2, %s270
          %s273 = sshll.u32 %s263, 4
          %s274 = int_to_ptr.vmem [resolvable:$true] %s273
          %276 = dma.hbm_to_vmem [thread:$0]  %s271, 64, %s274, %s260
        $region28: #{tpu_custom_call.1} parent=15 // pred_fallthru
          _
      $region16: #{tpu_custom_call.1} parent=5 // pred_fallthru
        _
      %p277 = scmp.le.s32.totalorder 1, %s18
      %p278 = scmp.lt.s32.totalorder %s18, 3
      %p279 = pnand %p277, %p278
      %p280 = pneg %p279
      // Predicated region
      $region29: #{tpu_custom_call.1} parent=5 // pred_check
        _
      $region30: #{tpu_custom_call.1} parent=5 // pred_check_branch
        %282 = sbr.rel (%p279) target = $region32
      $region31: #{tpu_custom_call.1} parent=5 // pred_region
        %s283 = ssub.s32 %s18, 1
        %s284 = sand.u32 %s49, 1
        %s285 = scalar_lea.sflag [#allocation7], %s284
        %s286 = sand.u32 %s49, 1
        %s287 = smul.addr %s286, 4
        %s288 = scalar_lea.vmem [#allocation6], %s287
        // Predicated region
        $region33: #{tpu_custom_call.1} parent=31 // pred_check
          %p289 = pneg %p62
        $region34: #{tpu_custom_call.1} parent=31 // pred_check_branch
          %291 = sbr.rel (%p289) target = $region36
        $region35: #{tpu_custom_call.1} parent=31 // pred_region
          %292 = dma.done %s285, 64
        $region36: #{tpu_custom_call.1} parent=31 // pred_fallthru
          _
        %s293 = sand.u32 %s113, 1
        %s294 = scalar_lea.sflag [#allocation9], %s293
        %s295 = sand.u32 %s113, 1
        %s296 = smul.addr %s295, 4
        %s297 = scalar_lea.vmem [#allocation8], %s296
        // Predicated region
        $region37: #{tpu_custom_call.1} parent=31 // pred_check
          %p298 = pneg %p126
        $region38: #{tpu_custom_call.1} parent=31 // pred_check_branch
          %300 = sbr.rel (%p298) target = $region40
        $region39: #{tpu_custom_call.1} parent=31 // pred_region
          %301 = dma.done %s294, 64
        $region40: #{tpu_custom_call.1} parent=31 // pred_fallthru
          _
        %s302 = sand.u32 %s49, 1
        %s303 = scalar_lea.sflag [#allocation7], %s302
        %s304 = sand.u32 %s49, 1
        %s305 = smul.addr %s304, 4
        %s306 = scalar_lea.vmem [#allocation6], %s305
        %p307 = pneg %p62
        %p308 = pneg %p59
        %s309 = sadd.s32 %s27, %s28
        %p310 = scmp.lt.s32.totalorder %s309, 0
        %s311 = scalar_select %p310, %s309, 0
        %p312 = scmp.lt.s32.totalorder %s311, 0
        %s313 = scalar_select %p312, %s311, 0
        %s314 = scalar_lea.vmem %s1, %s313
        %p315 = pneg %p94
        %p316 = pneg %p91
        %s317 = sand.u32 %s113, 1
        %s318 = scalar_lea.sflag [#allocation9], %s317
        %s319 = sand.u32 %s113, 1
        %s320 = smul.addr %s319, 4
        %s321 = scalar_lea.vmem [#allocation8], %s320
        %p322 = pneg %p126
        %p323 = pneg %p123
        %p324 = pneg %p152
        %p325 = pneg %p149
        %p326 = scmp.lt.s32.totalorder %s27, 1
        %s327 = scalar_select %p326, %s27, 1
        %s328 = smul.addr %s327, 8
        %s329 = scalar_lea.vmem %s3, %s328
        %p330 = pneg %p178
        %p331 = pneg %p175
        %p332 = scmp.lt.s32.totalorder %s27, 1
        %s333 = scalar_select %p332, %s27, 1
        %s334 = smul.addr %s333, 8
        %s335 = scalar_lea.vmem %s4, %s334
        %p336 = pneg %p204
        %p337 = pneg %p201
        %p338 = scmp.lt.s32.totalorder %s27, 1
        %s339 = scalar_select %p338, %s27, 1
        %s340 = scalar_lea.vmem %s5, %s339
        %s341 = sadd.s32 %s27, %s28
        %p342 = scmp.lt.s32.totalorder %s341, 0
        %s343 = scalar_select %p342, %s341, 0
        %s344 = sadd.s32 %s27, %s28
        %p345 = scmp.lt.s32.totalorder %s344, 0
        %s346 = scalar_select %p345, %s344, 0
        %p347 = scmp.lt.s32.totalorder %s346, 0
        %s348 = scalar_select %p347, %s346, 0
        %s349 = scalar_lea.vmem %s1, %s348
        %s350 = sadd.s32 %s27, %s28
        %p351 = scmp.lt.s32.totalorder %s350, 0
        %s352 = scalar_select %p351, %s350, 0
        %s353 = sadd.s32 %s27, %s28
        %p354 = scmp.lt.s32.totalorder %s353, 0
        %s355 = scalar_select %p354, %s353, 0
        %p356 = scmp.lt.s32.totalorder %s27, 1
        %s357 = scalar_select %p356, %s27, 1
        %s358 = smul.addr %s357, 8
        %s359 = scalar_lea.vmem %s3, %s358
        %p360 = scmp.lt.s32.totalorder %s27, 1
        %s361 = scalar_select %p360, %s27, 1
        %s362 = smul.addr %s361, 8
        %s363 = scalar_lea.vmem %s4, %s362
        %p364 = scmp.lt.s32.totalorder %s27, 1
        %s365 = scalar_select %p364, %s27, 1
        %s366 = scalar_lea.vmem %s5, %s365
        %p367 = scmp.eq.s32.totalorder %s28, 0
        // Predicated region
        $region41: #{tpu_custom_call.1} parent=31 // pred_check
          %p368 = pneg %p367
        $region42: #{tpu_custom_call.1} parent=31 // pred_check_branch
          %370 = sbr.rel (%p368) target = $region44
        $region43: #{tpu_custom_call.1} parent=31 // pred_region
          %vm371 = vcmask 7168
          %372 = vst.msk [vmem:[#allocation2] sm:$0xff] %vm371, 0.0
          %373 = vst.msk [vmem:[#allocation3] sm:$0xff] %vm371, 0.0
          %vm374 = vcmask 0
          %375 = vst.msk [vmem:[#allocation4] sm:$0x1] %vm374, 0.0
        $region44: #{tpu_custom_call.1} parent=31 // pred_fallthru
          _
        %s376 = sadd.s32 %s27, %s28
        %s377 = smul.u32 %s376, 128
        %v378 = vlaneseq
        %v379 = vand.u32 %v378, 127
        %v380 = vstv %s377
        %v381 = vadd.s32 %v380, %v379
        %vm382 = vcmp.lt.s32.totalorder %v381, 64
        %v383 = vld [vmem:[%s288] sm:$0xf]
        %v384 = vunpack.c.l.bf16 %v383
        %v385 = vld [vmem:[%s297] sm:$0xf]
        %v386 = vunpack.c.l.bf16 %v385
        %v387 = vld [vmem:[%s349] sm:$0x1]
        %v388 = vunpack.c.0.s8 %v387
        %vm389 = vcmp.eq.s32.totalorder %v388, 1
        %vm390 = vmand %vm389, %vm382
        %vm391 = vcmp.eq.s32.totalorder %v388, 0
        %vm392 = vmand %vm391, %vm382
        %vm393 = vmor %vm390, %vm392
        %v394 = vsub.f32 1.0, %v384
        %v395 = vsel %vm390, 1, 0
        %v396 = vlaneseq
        %v397 = vshrl.u32 %v396, 7
        %v398 = vsub.s32 0, %v397
        %v399 = vrot.slane %v395, %v398
        %vm400 = vcmp.eq.s32.totalorder %v399, 1
        %v401 = vsel %vm400, %v384, %v394
        %v402 = vlog2.pop %v401
        %v403 = vmul.f32 %v402, 0.6931472
        %v404 = vmax.f32 %v403, -100.0
        %v405 = vld [vmem:[#allocation2] sm:$0xff]
        %v406 = vsel %vm400, %v404, 0.0
        %407 = vadd.xlane.f32.xlu0 %v406
        %v408 = vpop.xlane.xlu0 %407
        %v409 = vadd.f32 %v405, %v408
        %vm410 = vcmask 7168
        %411 = vst.msk [vmem:[#allocation2] sm:$0xff] %vm410, %v409
        %v412 = vld [vmem:[#allocation3] sm:$0xff]
        %v413 = vsel %vm393, 1, 0
        %v414 = vlaneseq
        %v415 = vshrl.u32 %v414, 7
        %v416 = vsub.s32 0, %v415
        %v417 = vrot.slane %v413, %v416
        %vm418 = vcmp.eq.s32.totalorder %v417, 1
        %v419 = vsel %vm418, %v404, 0.0
        %420 = vadd.xlane.f32.xlu0 %v419
        %v421 = vpop.xlane.xlu0 %420
        %v422 = vadd.f32 %v412, %v421
        %423 = vst.msk [vmem:[#allocation3] sm:$0xff] %vm410, %v422
        %424 = vrot.lane.b32.xlu0 %v386, 1
        %v425 = vpop.permute.xlu0 %424
        %v426 = vsub.f32 %v425, %v386
        %vm427 = vcmp.gt.s32.totalorder %v379, 0
        %vm428 = vmand %vm427, %vm382
        %v429 = vld [vmem:[#allocation4] sm:$0x1]
        %v430 = vmax.f32 %v426, 0.0
        %v431 = vsel %vm428, 1, 0
        %vm432 = vcmp.eq.s32.totalorder %v431, 1
        %v433 = vsel %vm432, %v430, 0.0
        %434 = vadd.xlane.f32.xlu0 %v433
        %v435 = vpop.xlane.xlu0 %434
        %v436 = vrot.slane %v435, 4
        %v437 = vadd.f32 %v435, %v436
        %v438 = vrot.slane %v437, 2
        %v439 = vadd.f32 %v437, %v438
        %v440 = vrot.slane %v439, 1
        %v441 = vadd.f32 %v439, %v440
        %s442 = vtos %v441
        %v443 = vstv %s442
        %v444 = vadd.f32 %v429, %v443
        %vm445 = vcmask 0
        %446 = vst.msk [vmem:[#allocation4] sm:$0x1] %vm445, %v444
        %p447 = scmp.gt.s32.totalorder %s28, 0
        %p448 = scmp.lt.s32.totalorder %s377, 64
        %p449 = pnand %p447, %p448
        %p450 = pneg %p449
        // Predicated region
        $region45: #{tpu_custom_call.1} parent=31 // pred_check
          _
        $region46: #{tpu_custom_call.1} parent=31 // pred_check_branch
          %452 = sbr.rel (%p449) target = $region48
        $region47: #{tpu_custom_call.1} parent=31 // pred_region
          %v453 = vld [vmem:[#allocation5] sm:$0xff]
          %v454 = vsub.f32 %v453, %v386
          %v455 = vld [vmem:[#allocation4] sm:$0x1]
          %v456 = vmax.f32 %v454, 0.0
          %v457 = vsel %vm410, %v456, 0.0
          %458 = vadd.xlane.f32.xlu0 %v457
          %v459 = vpop.xlane.xlu0 %458
          %v460 = vrot.slane %v459, 4
          %v461 = vadd.f32 %v459, %v460
          %v462 = vrot.slane %v461, 2
          %v463 = vadd.f32 %v461, %v462
          %v464 = vrot.slane %v463, 1
          %v465 = vadd.f32 %v463, %v464
          %s466 = vtos %v465
          %v467 = vstv %s466
          %v468 = vadd.f32 %v455, %v467
          %469 = vst.msk [vmem:[#allocation4] sm:$0x1] %vm445, %v468
        $region48: #{tpu_custom_call.1} parent=31 // pred_fallthru
          _
        %471 = vrot.lane.b32.xlu0 %v386, 1
        %v472 = vpop.permute.xlu0 %471
        %474 = vst.msk [vmem:[#allocation5] sm:$0xff] %vm410, %v472
        // Predicated region
        $region49: #{tpu_custom_call.1} parent=31 // pred_check
          %p475 = pneg %p367
        $region50: #{tpu_custom_call.1} parent=31 // pred_check_branch
          %477 = sbr.rel (%p475) target = $region52
        $region51: #{tpu_custom_call.1} parent=31 // pred_region
          %v478 = vld [vmem:[#allocation2] sm:$0xff]
          %479 = vst.msk [vmem:[%s359] sm:$0xff] %vm410, %v478
          %v480 = vld [vmem:[#allocation3] sm:$0xff]
          %481 = vst.msk [vmem:[%s363] sm:$0xff] %vm410, %v480
          %v482 = vld [vmem:[#allocation4] sm:$0x1]
          %483 = vst.msk [vmem:[%s366] sm:$0x1] %vm445, %v482
        $region52: #{tpu_custom_call.1} parent=31 // pred_fallthru
          _
        %p484 = scmp.lt.s32.totalorder %s27, 1
        %s485 = scalar_select %p484, %s27, 1
        %s486 = smul.addr %s485, 8
        %s487 = scalar_lea.vmem %s3, %s486
        %p488 = scmp.lt.s32.totalorder %s27, 1
        %s489 = scalar_select %p488, %s27, 1
        %s490 = smul.addr %s489, 8
        %s491 = scalar_lea.vmem %s4, %s490
        %p492 = scmp.lt.s32.totalorder %s27, 1
        %s493 = scalar_select %p492, %s27, 1
        %s494 = scalar_lea.vmem %s5, %s493
        // Predicated region
        $region53: #{tpu_custom_call.1} parent=31 // pred_check
          %p495 = pneg %p149
        $region54: #{tpu_custom_call.1} parent=31 // pred_check_branch
          %497 = sbr.rel (%p495) target = $region56
        $region55: #{tpu_custom_call.1} parent=31 // pred_region
          _
        $region56: #{tpu_custom_call.1} parent=31 // pred_fallthru
          _
        // Predicated region
        $region57: #{tpu_custom_call.1} parent=31 // pred_check
          %p498 = pneg %p175
        $region58: #{tpu_custom_call.1} parent=31 // pred_check_branch
          %500 = sbr.rel (%p498) target = $region60
        $region59: #{tpu_custom_call.1} parent=31 // pred_region
          _
        $region60: #{tpu_custom_call.1} parent=31 // pred_fallthru
          _
        // Predicated region
        $region61: #{tpu_custom_call.1} parent=31 // pred_check
          %p501 = pneg %p201
        $region62: #{tpu_custom_call.1} parent=31 // pred_check_branch
          %503 = sbr.rel (%p501) target = $region64
        $region63: #{tpu_custom_call.1} parent=31 // pred_region
          _
        $region64: #{tpu_custom_call.1} parent=31 // pred_fallthru
          _
      $region32: #{tpu_custom_call.1} parent=5 // pred_fallthru
        _
      %p504 = scmp.le.s32.totalorder 2, %s18
      // Predicated region
      $region65: #{tpu_custom_call.1} parent=5 // pred_check
        %p505 = pneg %p504
      $region66: #{tpu_custom_call.1} parent=5 // pred_check_branch
        %507 = sbr.rel (%p505) target = $region68
      $region67: #{tpu_custom_call.1} parent=5 // pred_region
        %s508 = ssub.s32 %s18, 2
        // Predicated region
        $region69: #{tpu_custom_call.1} parent=67 // pred_check
          %p509 = pneg %p155
        $region70: #{tpu_custom_call.1} parent=67 // pred_check_branch
          %511 = sbr.rel (%p509) target = $region72
        $region71: #{tpu_custom_call.1} parent=67 // pred_region
          %p512 = scmp.lt.s32.totalorder %s29, 1
          %s513 = scalar_select %p512, %s29, 1
          %s514 = smul.addr %s513, 8
          %s515 = scalar_lea.vmem %s3, %s514
        $region72: #{tpu_custom_call.1} parent=67 // pred_fallthru
          _
        // Predicated region
        $region73: #{tpu_custom_call.1} parent=67 // pred_check
          %p516 = pneg %p181
        $region74: #{tpu_custom_call.1} parent=67 // pred_check_branch
          %518 = sbr.rel (%p516) target = $region76
        $region75: #{tpu_custom_call.1} parent=67 // pred_region
          %p519 = scmp.lt.s32.totalorder %s29, 1
          %s520 = scalar_select %p519, %s29, 1
          %s521 = smul.addr %s520, 8
          %s522 = scalar_lea.vmem %s4, %s521
        $region76: #{tpu_custom_call.1} parent=67 // pred_fallthru
          _
        // Predicated region
        $region77: #{tpu_custom_call.1} parent=67 // pred_check
          %p523 = pneg %p207
        $region78: #{tpu_custom_call.1} parent=67 // pred_check_branch
          %525 = sbr.rel (%p523) target = $region80
        $region79: #{tpu_custom_call.1} parent=67 // pred_region
          %p526 = scmp.lt.s32.totalorder %s29, 1
          %s527 = scalar_select %p526, %s29, 1
          %s528 = scalar_lea.vmem %s5, %s527
        $region80: #{tpu_custom_call.1} parent=67 // pred_fallthru
          _
      $region68: #{tpu_custom_call.1} parent=5 // pred_fallthru
        _
    $region6: #{tpu_custom_call.1} parent=1 // loop_footer
      %s22 = sadd.s32 1, %s18
    $region7: #{tpu_custom_call.1} parent=1 // loop_footer_branch
      %17 = sbr.rel target = $region3
    $region8: #{tpu_custom_call.1} parent=1 // loop_exit
      _
    %529 = vsyncpa [#allocation7], 1
    %s530 = scalar_lea.sflag [#allocation7], 1
    %531 = vsyncpa %s530, 1
    %532 = vsyncpa [#allocation9], 1
    %s533 = scalar_lea.sflag [#allocation9], 1
    %534 = vsyncpa %s533, 1

</llo_original>
